<compile_context>
chip_gen: v5e
topology: v5e:2x2
jax: 0.10.0
libtpu: 0.0.40
codegen_flags: <defaults>
</compile_context>

<pallas_src>
import math

import jax
import jax.numpy as jnp
from jax.experimental import pallas as pl
from jax.experimental.pallas import tpu as pltpu


_LANES = 128


def _round_up(x, m):
    return ((x + m - 1) // m) * m


# ---------------------------------------------------------------------------
# Focal loss (CenterNet) — lane-dense view, 2048-row tiles, 2-way core split
# ---------------------------------------------------------------------------

def focal_loss_sums(hm_logits, hm_gt):
    """Returns (sum pos_loss, sum neg_loss, num_pos) as f32 scalars.

    Takes the raw heatmap logits and the ground-truth heatmap in any layout
    (elementwise + global sum => layout independent).  _sigmoid
    (clamp(sigmoid(x), 1e-4, 1-1e-4)) is fused into the kernel.
    """
    total = int(hm_logits.size)
    n_rows = -(-total // _LANES)
    rem = n_rows * _LANES - total

    flat_p = jnp.ravel(hm_logits).astype(jnp.float32)
    flat_g = jnp.ravel(hm_gt).astype(jnp.float32)
    if rem:
        # Only taken when total is not lane-aligned (uncommon).  gt pad value
        # 2.0 => neither pos (==1) nor neg (<1): zero contribution.
        flat_p = jnp.pad(flat_p, (0, rem))
        flat_g = jnp.pad(flat_g, (0, rem), constant_values=2.0)
    p2d = flat_p.reshape(n_rows, _LANES)
    g2d = flat_g.reshape(n_rows, _LANES)

    # Big tiles amortize the ~0.35us per-grid-step overhead; 2 inputs x 2
    # buffers x (2048,128) f32 = 4 MiB, safe under every generation's default
    # scoped VMEM.  If n_rows is smaller, the block equals the full array
    # (allowed even when not 8-aligned).
    tile_rows = min(2048, n_rows)
    n_tiles = -(-n_rows // tile_rows)
    inner = -(-n_tiles // 2)          # row tiles per core

    log_lo = math.log(1e-4)
    log_hi = math.log(1.0 - 1e-4)

    def row_map(c, i):
        # Clamp so the second core's overflow step (odd n_tiles) re-reads an
        # in-bounds tile; its rows are fully masked in-kernel.
        return (jnp.minimum(c * inner + i, n_tiles - 1), 0)

    def kernel(p_ref, g_ref, out_ref, acc_ref):
        c = pl.program_id(0)
        i = pl.program_id(1)

        @pl.when(i == 0)
        def _():
            acc_ref[...] = jnp.zeros_like(acc_ref)

        # Mask rows outside the true extent (partial last tile / duplicated
        # clamped tile on the second core).
        row0 = (c * inner + i) * tile_rows
        rid = row0 + jax.lax.broadcasted_iota(jnp.int32, (tile_rows, 1), 0)
        ok = rid < n_rows
        x = jnp.where(ok, p_ref[...], 0.0)
        gt = jnp.where(ok, g_ref[...], 2.0)

        pos = (gt == 1.0).astype(jnp.float32)
        neg = (gt < 1.0).astype(jnp.float32)

        # Numerically stable clamped-sigmoid focal terms:
        #   e = exp(-|x|) in (0,1]  (never overflows)
        #   sigmoid(x)      = where(x>=0, 1/(1+e), e/(1+e))
        #   log sigmoid(x)  = -(max(-x,0) + log(1+e))
        #   log(1-sigmoid)  = -(max( x,0) + log(1+e))
        e = jnp.exp(-jnp.abs(x))
        log1pe = jnp.log(1.0 + e)
        inv = pl.reciprocal(1.0 + e, approx=True)          # EUP vrcp, free slot
        pred = jnp.clip(jnp.where(x >= 0.0, inv, e * inv), 1e-4, 1.0 - 1e-4)
        log_pred = jnp.clip(-(jnp.maximum(-x, 0.0) + log1pe), log_lo, log_hi)
        log_1mp = jnp.clip(-(jnp.maximum(x, 0.0) + log1pe), log_lo, log_hi)

        neg_w = jnp.square(jnp.square(1.0 - gt))            # (1 - gt)^4, VALU only
        pos_loss = log_pred * jnp.square(1.0 - pred) * pos
        neg_loss = log_1mp * jnp.square(pred) * neg_w * neg

        # rows of the (8,128) accumulator: 0 = pos, 1 = neg, 2 = num_pos
        acc_ref[0:1, :] += jnp.sum(pos_loss, axis=0, keepdims=True)
        acc_ref[1:2, :] += jnp.sum(neg_loss, axis=0, keepdims=True)
        acc_ref[2:3, :] += jnp.sum(pos, axis=0, keepdims=True)

        @pl.when(i == pl.num_programs(1) - 1)
        def _():
            out_ref[0] = acc_ref[...]

    part = pl.pallas_call(
        kernel,
        out_shape=jax.ShapeDtypeStruct((2, 8, _LANES), jnp.float32),
        grid_spec=pltpu.PrefetchScalarGridSpec(
            num_scalar_prefetch=0,
            grid=(2, inner),
            in_specs=[pl.BlockSpec((tile_rows, _LANES), row_map),
                      pl.BlockSpec((tile_rows, _LANES), row_map)],
            out_specs=pl.BlockSpec((1, 8, _LANES), lambda c, i: (c, 0, 0)),
            scratch_shapes=[pltpu.VMEM((8, _LANES), jnp.float32)],
        ),
        compiler_params=pltpu.CompilerParams(
            dimension_semantics=("parallel", "arbitrary")),
    )(p2d, g2d)

    sums = jnp.sum(part[:, :3, :], axis=(0, 2))    # tiny jnp epilogue
    return sums[0], sums[1], sums[2]


# ---------------------------------------------------------------------------
# Masked L1 (RegL1Loss) — B*K*2 elements, plain jnp (per perf review)
# ---------------------------------------------------------------------------

def reg_l1_loss(pred, mask, target):
    """pred/target (B,K,C), mask (B,K).  Matches RegL1Loss."""
    m = jnp.broadcast_to(mask[:, :, None].astype(jnp.float32), pred.shape)
    num = jnp.sum(jnp.abs(pred * m - target * m))
    return num / (jnp.sum(m) + 1e-4)


# ---------------------------------------------------------------------------
# ReID head: normalize -> bf16 MXU classifier -> CE (ignore_index = -1)
# class axis tiled (online LSE) and split 2-way across cores.
# ---------------------------------------------------------------------------

def prepare_classifier(cls_w, cls_b, max_rows):
    """Pad + bf16-cast the ReID classifier once per parameter update.

    cls_w: (nID, D) f32 (nn.Linear weight layout), cls_b: (nID,) or (1, nID).
    Doing this per forward would re-stream the full f32 W every call.
    """
    nID, D = cls_w.shape
    Dp = _round_up(D, _LANES)
    nID_lane = _round_up(nID, _LANES)
    # Large class tiles amortize per-grid-step overhead; shrink when the row
    # count is big so the (Np, TN) f32 logits intermediate stays in VMEM.
    TN = min(2048 if max_rows <= 1024 else 1024, nID_lane)
    nIDp = _round_up(nID_lane, TN)

    w = jnp.pad(jnp.transpose(cls_w.astype(jnp.float32)),
                ((0, Dp - D), (0, nIDp - nID))).astype(jnp.bfloat16)
    b = jnp.pad(cls_b.reshape(1, -1).astype(jnp.float32),
                ((0, 0), (0, nIDp - nID)), constant_values=-1e30)
    return {'w': w, 'b': b, 'D': D, 'Dp': Dp, 'nID': nID, 'nIDp': nIDp, 'TN': TN}


def id_loss_sums(feat, clf, targets, rmask, emb_scale):
    """feat (N,D) f32 gathered id-head rows, clf from prepare_classifier,
    targets (N,) int32, rmask (N,) f32.
    Returns (sum of per-row CE over valid rows, valid-row count)."""
    N, D = feat.shape
    Dp, nIDp, TN = clf['Dp'], clf['nIDp'], clf['TN']
    Np = _round_up(max(N, 1), 16)          # 16: bf16 sublane tile for xn scratch

    f = jnp.pad(feat.astype(jnp.float32), ((0, Np - N), (0, Dp - D)))
    t = jnp.pad(targets.reshape(-1, 1).astype(jnp.int32),
                ((0, Np - N), (0, 0)), constant_values=-1)

    n_blocks = nIDp // TN
    half = -(-n_blocks // 2)               # class tiles per core

    def cls_map(c, j):
        return (0, jnp.minimum(c * half + j, n_blocks - 1))

    def kernel(f_ref, w_ref, b_ref, t_ref, m_out, l_out, tl_out,
               xn_ref, m_run, l_run, tl_run):
        c = pl.program_id(0)
        j = pl.program_id(1)
        g = c * half + j                   # global class-block index

        @pl.when(j == 0)
        def _():
            x = f_ref[...]
            ssq = jnp.sum(x * x, axis=1, keepdims=True)
            inv = jax.lax.rsqrt(jnp.maximum(ssq, 1e-24))   # F.normalize, eps=1e-12
            xn_ref[...] = (emb_scale * x * inv).astype(jnp.bfloat16)
            m_run[...] = jnp.full_like(m_run, -jnp.inf)
            l_run[...] = jnp.zeros_like(l_run)
            tl_run[...] = jnp.zeros_like(tl_run)

        @pl.when(g < n_blocks)             # skip the duplicated clamped tail tile
        def _():
            # bf16 MXU matmul with f32 accumulate; bias stays f32 so the -1e30
            # padded-class bias never wins the max and exp underflows to 0.
            logits = jnp.dot(xn_ref[...], w_ref[...],
                             preferred_element_type=jnp.float32) + b_ref[...]
            tgt = t_ref[...]
            lane = jax.lax.broadcasted_iota(jnp.int32, logits.shape, 1) + g * TN

            m_new = jnp.maximum(m_run[...], jnp.max(logits, axis=1, keepdims=True))
            alpha = jnp.exp(m_run[...] - m_new)
            # TODO(synk): optional v6e/v7x micro-opt — bf16 exp here roughly
            # doubles EUP throughput at ~1e-3 relative LSE change; kept f32.
            l_run[...] = alpha * l_run[...] + jnp.sum(jnp.exp(logits - m_new),
                                                      axis=1, keepdims=True)
            tl_run[...] = tl_run[...] + jnp.sum(jnp.where(lane == tgt, logits, 0.0),
                                                axis=1, keepdims=True)
            m_run[...] = m_new

        @pl.when(j == pl.num_programs(1) - 1)
        def _():
            m_out[0] = m_run[...]
            l_out[0] = l_run[...]
            tl_out[0] = tl_run[...]

    m_p, l_p, tl_p = pl.pallas_call(
        kernel,
        out_shape=(jax.ShapeDtypeStruct((2, Np, 1), jnp.float32),
                   jax.ShapeDtypeStruct((2, Np, 1), jnp.float32),
                   jax.ShapeDtypeStruct((2, Np, 1), jnp.float32)),
        grid_spec=pltpu.PrefetchScalarGridSpec(
            num_scalar_prefetch=0,
            grid=(2, half),
            in_specs=[pl.BlockSpec((Np, Dp), lambda c, j: (0, 0)),
                      pl.BlockSpec((Dp, TN), cls_map),
                      pl.BlockSpec((1, TN), cls_map),
                      pl.BlockSpec((Np, 1), lambda c, j: (0, 0))],
            out_specs=[pl.BlockSpec((1, Np, 1), lambda c, j: (c, 0, 0)),
                       pl.BlockSpec((1, Np, 1), lambda c, j: (c, 0, 0)),
                       pl.BlockSpec((1, Np, 1), lambda c, j: (c, 0, 0))],
            scratch_shapes=[pltpu.VMEM((Np, Dp), jnp.bfloat16),   # normalized feat
                            pltpu.VMEM((Np, 1), jnp.float32),     # running max
                            pltpu.VMEM((Np, 1), jnp.float32),     # running exp-sum
                            pltpu.VMEM((Np, 1), jnp.float32)],    # target logit
        ),
        compiler_params=pltpu.CompilerParams(
            dimension_semantics=("parallel", "arbitrary")),
    )(f, clf['w'], clf['b'], t)

    # 2-way log-sum-exp merge of the per-core partials (tiny O(N) jnp epilogue).
    m0, m1 = m_p[0, :N, 0], m_p[1, :N, 0]
    l0, l1 = l_p[0, :N, 0], l_p[1, :N, 0]
    mm = jnp.maximum(m0, m1)
    ll = l0 * jnp.exp(m0 - mm) + l1 * jnp.exp(m1 - mm)
    lse = mm + jnp.log(ll)
    tl = tl_p[0, :N, 0] + tl_p[1, :N, 0]

    valid = (rmask > 0.0) & (targets != -1)
    ce_sum = jnp.sum(jnp.where(valid, lse - tl, 0.0))
    cnt = jnp.sum(valid.astype(jnp.float32))
    return ce_sum, cnt


# ---------------------------------------------------------------------------
# JAX glue mirroring the PyTorch module
# ---------------------------------------------------------------------------

def gather_feat_nchw(feat_nchw, ind):
    """_tranpose_and_gather_feat without transposing the full map:
    gather along the flattened spatial axis of (B,C,H*W), then transpose the
    tiny (B,C,K) result -> (B,K,C)."""
    B, C, H, W = feat_nchw.shape
    flat = feat_nchw.reshape(B, C, H * W)
    g = jnp.take_along_axis(flat, ind[:, None, :], axis=2)   # (B, C, K)
    return jnp.transpose(g, (0, 2, 1))                        # (B, K, C)


class Opt:
    num_stacks = 1
    mse_loss = False
    reg_loss = 'l1'
    dense_wh = False
    norm_wh = False
    cat_spec_wh = False
    reg_offset = True
    hm_weight = 1.0
    wh_weight = 0.1
    off_weight = 1.0
    id_weight = 1.0
    reid_dim = 32
    nID = 16


def mot_loss_forward(outputs, batch, p_tmp_j, phase, opt, clf):
    """Reproduces MotLoss.forward (train path; FocalLoss + RegL1Loss + ID CE)."""
    emb_scale = math.sqrt(2) * math.log(opt.nID - 1)
    learningrate_np = 0.01
    rho = 0.5

    hm_loss, wh_loss, off_loss, id_loss = 0.0, 0.0, 0.0, 0.0
    for s in range(opt.num_stacks):
        output = outputs[s]

        # ---- heatmap focal loss ---------------------------------------------
        pos_s, neg_s, n_pos = focal_loss_sums(output['hm'], batch['hm'])
        hm_l = jnp.where(n_pos == 0, -neg_s,
                         -(pos_s + neg_s) / jnp.maximum(n_pos, 1.0))
        hm_loss = hm_loss + hm_l / opt.num_stacks

        ind = batch['ind']
        rmask = batch['reg_mask'].astype(jnp.float32)

        # ---- wh / offset regressions (RegL1Loss) -----------------------------
        if opt.wh_weight > 0:
            wh_pred = gather_feat_nchw(output['wh'], ind)          # (B,K,2)
            wh_loss = wh_loss + reg_l1_loss(wh_pred, rmask, batch['wh']) / opt.num_stacks
        if opt.reg_offset and opt.off_weight > 0:
            rp = gather_feat_nchw(output['reg'], ind)              # (B,K,2)
            off_loss = off_loss + reg_l1_loss(rp, rmask, batch['reg']) / opt.num_stacks

        # ---- ReID classification loss ----------------------------------------
        if opt.id_weight > 0:
            id_head = gather_feat_nchw(output['id'], ind)          # (B,K,D)
            BK = id_head.shape[0] * id_head.shape[1]
            feat = id_head.reshape(BK, id_head.shape[-1]).astype(jnp.float32)
            tgt = batch['ids'].reshape(BK).astype(jnp.int32)
            rm = rmask.reshape(BK)
            ls, cnt = id_loss_sums(feat, clf, tgt, rm, emb_scale)
            # CE mean over non-ignored rows; guard the all-ignored case
            # (PyTorch would return NaN there).
            id_loss = id_loss + jnp.where(cnt > 0,
                                          ls / jnp.maximum(cnt, 1.0), 0.0)

    loss_set = {'hm': hm_loss, 'wh': wh_loss, 'off': off_loss, 'id': id_loss}

    # ---- dynamic weight update (host-side scalar math, as in the module) ----
    def q(t, p):
        return math.exp(math.log(p[t]) + learningrate_np * float(loss_set[t]))

    def f(lamda, p):
        sum1 = sum2 = sum3 = 0.0
        for t in ['hm', 'wh', 'off', 'id']:
            tmp = q(t, p) ** ((1 + lamda) ** (-1))
            sum1 += math.log(q(t, p)) * tmp
            sum2 += (1 + lamda) * tmp
            sum3 += tmp
        return sum1 / sum2 - math.log(sum3) + math.log(len(loss_set)) - rho

    def compute_lamda(p, epsilon=0.01, beta=10):
        lamda_l, lamda_r = 0, 0
        if f(0, p) <= 0:
            return 0
        while f(lamda_r, p) > 0 and f(lamda_r, p) == 0:
            lamda_l = lamda_r
            lamda_r = lamda_l + beta
        lamda_c = (lamda_l + lamda_r) / 2
        while f(lamda_c, p) > epsilon or f(lamda_c, p) < -epsilon:
            lamda_c = (lamda_l + lamda_r) / 2
            if f(lamda_c, p) > 0:
                lamda_l = lamda_c
            else:
                lamda_r = lamda_c
        return lamda_c

    if p_tmp_j is {}:   # identity check, always False (mirrors original code)
        p_tmp_j = {'hm': 0.25, 'wh': 0.25, 'off': 0.25, 'id': 0.25}
    elif phase == 'train':
        p_tmp_j = p_tmp_j
    else:
        # TODO(synk): eval-phase bisection is pure host scalar math (no Pallas
        # equivalent); mirrored above, only the train path is exercised here.
        lamda = compute_lamda(p_tmp_j)
        son, mor = {}, 0.0
        for t in ['hm', 'wh', 'off', 'id']:
            son[t] = math.exp(((1 + lamda) ** (-1)) *
                              (math.log(p_tmp_j[t]) + learningrate_np * float(loss_set[t])))
            mor += son[t]
        for t in ['hm', 'wh', 'off', 'id']:
            p_tmp_j[t] = son[t] / mor

    loss = (p_tmp_j['hm'] * hm_loss + p_tmp_j['wh'] * wh_loss
            + p_tmp_j['off'] * off_loss + p_tmp_j['id'] * id_loss)
    loss_stats = {'loss': loss, 'hm_loss': hm_loss, 'wh_loss': wh_loss,
                  'off_loss': off_loss, 'id_loss': id_loss}
    return loss, loss_stats, p_tmp_j


# ---------------------------------------------------------------------------
# main
# ---------------------------------------------------------------------------

if __name__ == "__main__":
    opt = Opt()
    B, H, W, K = 2, 16, 16, 8
    C_hm, C_wh, C_reg, D, nID = 1, 2, 2, opt.reid_dim, opt.nID

    key = jax.random.PRNGKey(0)
    ks = jax.random.split(key, 12)

    # network outputs (PyTorch NCHW convention)
    outputs = [{
        'hm': jax.random.normal(ks[0], (B, C_hm, H, W), jnp.float32),
        'wh': jax.random.normal(ks[1], (B, C_wh, H, W), jnp.float32),
        'reg': jax.random.normal(ks[2], (B, C_reg, H, W), jnp.float32),
        'id': jax.random.normal(ks[3], (B, D, H, W), jnp.float32),
    }]

    # ground-truth batch
    hm_gt = jax.random.uniform(ks[4], (B, C_hm, H, W), jnp.float32) ** 4
    hm_gt = hm_gt.at[:, 0, 4, 4].set(1.0)          # ensure some positive peaks
    hm_gt = hm_gt.at[:, 0, 9, 11].set(1.0)
    ind = jax.random.randint(ks[5], (B, K), 0, H * W, jnp.int32)
    reg_mask = jnp.zeros((B, K), jnp.float32).at[:, :5].set(1.0)
    ids = jax.random.randint(ks[6], (B, K), 0, nID, jnp.int32)
    ids = ids.at[0, 1].set(-1)                     # exercise ignore_index=-1
    batch = {
        'hm': hm_gt,
        'ind': ind,
        'reg_mask': reg_mask,
        'ids': ids,
        'wh': jax.random.uniform(ks[7], (B, K, C_wh), jnp.float32) * 4.0,
        'reg': jax.random.uniform(ks[8], (B, K, C_reg), jnp.float32),
    }

    # classifier = nn.Linear(emb_dim, nID); deterministic synthetic init.
    # Pad + bf16 cast are done ONCE here (per parameter update), not per call.
    bound = 1.0 / math.sqrt(D)
    cls_w = jax.random.uniform(ks[9], (nID, D), jnp.float32, -bound, bound)
    cls_b = jax.random.uniform(ks[10], (nID,), jnp.float32, -bound, bound)
    clf = prepare_classifier(cls_w, cls_b, max_rows=B * K)

    p_tmp_j = {'hm': 0.25, 'wh': 0.25, 'off': 0.25, 'id': 0.25}
    loss, loss_stats, p_out = mot_loss_forward(outputs, batch, p_tmp_j, 'train',
                                               opt, clf)
    jax.block_until_ready(loss)
    for v in loss_stats.values():
        jax.block_until_ready(v)
    print("KERNEL_OK")
</pallas_src>

<mosaic_0001>
module attributes {stable_mosaic.version = 11 : i64} {
  func.func @kernel(%arg0: i32, %arg1: i32, %arg2: memref<4x128xf32, #tpu.memory_space<vmem>>, %arg3: memref<4x128xf32, #tpu.memory_space<vmem>>, %arg4: memref<1x8x128xf32, #tpu.memory_space<vmem>>, %arg5: memref<8x128xf32, #tpu.memory_space<vmem>>) attributes {dimension_semantics = [#tpu.dimension_semantics<parallel>, #tpu.dimension_semantics<arbitrary>], iteration_bounds = array<i64: 2, 1>, scalar_prefetch = 0 : i64, scratch_operands = 1 : i64, tpu.core_type = #tpu.core_type<tc>, window_params = [{transform_indices = @transform_0, window_bounds = array<i64: 4, 128>}, {transform_indices = @transform_1, window_bounds = array<i64: 4, 128>}, {transform_indices = @transform_2, window_bounds = array<i64: 1, 8, 128>}]} {
    %c0_i32 = arith.constant 0 : i32
    %0 = arith.cmpi eq, %arg1, %c0_i32 : i32
    %1 = arith.extui %0 : i1 to i32
    %c0_i32_0 = arith.constant 0 : i32
    %2 = arith.cmpi ne, %1, %c0_i32_0 : i32
    scf.if %2 {
      %cst_40 = arith.constant 0.000000e+00 : f32
      %98 = vector.broadcast %cst_40 : f32 to vector<8x128xf32>
      %c0_41 = arith.constant 0 : index
      %c0_42 = arith.constant 0 : index
      %99 = vector.load %arg5[%c0_41, %c0_42] : memref<8x128xf32, #tpu.memory_space<vmem>>, vector<8x128xf32>
      tpu.vector_store %arg5[%c0_41, %c0_42], %98 {strides = array<i32>} : memref<8x128xf32, #tpu.memory_space<vmem>>, vector<8x128xf32>,
    } else {
    }
    %c1_i32 = arith.constant 1 : i32
    %3 = arith.muli %arg0, %c1_i32 : i32
    %4 = arith.addi %3, %arg1 : i32
    %c4_i32 = arith.constant 4 : i32
    %5 = arith.muli %4, %c4_i32 : i32
    %6 = tpu.iota {dimensions = array<i32: 0>} : vector<4x1xi32>
    %7 = vector.broadcast %5 : i32 to vector<4x1xi32>
    %8 = arith.addi %7, %6 : vector<4x1xi32>
    %c4_i32_1 = arith.constant 4 : i32
    %9 = vector.broadcast %c4_i32_1 : i32 to vector<4x1xi32>
    %10 = arith.cmpi slt, %8, %9 : vector<4x1xi32>
    %c0 = arith.constant 0 : index
    %c0_2 = arith.constant 0 : index
    %11 = vector.load %arg2[%c0, %c0_2] : memref<4x128xf32, #tpu.memory_space<vmem>>, vector<4x128xf32>
    %cst = arith.constant 0.000000e+00 : f32
    %12 = vector.shape_cast %10 : vector<4x1xi1> to vector<4x1xi1>
    %13 = vector.broadcast %12 : vector<4x1xi1> to vector<4x128xi1>
    %14 = vector.broadcast %cst : f32 to vector<4x128xf32>
    %15 = arith.select %13, %11, %14 : vector<4x128xi1>, vector<4x128xf32>
    %c0_3 = arith.constant 0 : index
    %c0_4 = arith.constant 0 : index
    %16 = vector.load %arg3[%c0_3, %c0_4] : memref<4x128xf32, #tpu.memory_space<vmem>>, vector<4x128xf32>
    %cst_5 = arith.constant 2.000000e+00 : f32
    %17 = vector.shape_cast %10 : vector<4x1xi1> to vector<4x1xi1>
    %18 = vector.broadcast %17 : vector<4x1xi1> to vector<4x128xi1>
    %19 = vector.broadcast %cst_5 : f32 to vector<4x128xf32>
    %20 = arith.select %18, %16, %19 : vector<4x128xi1>, vector<4x128xf32>
    %cst_6 = arith.constant 1.000000e+00 : f32
    %21 = vector.broadcast %cst_6 : f32 to vector<4x128xf32>
    %22 = arith.cmpf oeq, %20, %21 : vector<4x128xf32>
    %23 = arith.extui %22 : vector<4x128xi1> to vector<4x128xi32>
    %24 = arith.sitofp %23 : vector<4x128xi32> to vector<4x128xf32>
    %cst_7 = arith.constant 1.000000e+00 : f32
    %25 = vector.broadcast %cst_7 : f32 to vector<4x128xf32>
    %26 = arith.cmpf olt, %20, %25 : vector<4x128xf32>
    %27 = arith.extui %26 : vector<4x128xi1> to vector<4x128xi32>
    %28 = arith.sitofp %27 : vector<4x128xi32> to vector<4x128xf32>
    %29 = math.absf %15 : vector<4x128xf32>
    %cst_8 = arith.constant 0.000000e+00 : f32
    %30 = vector.broadcast %cst_8 : f32 to vector<4x128xf32>
    %31 = arith.subf %30, %29 : vector<4x128xf32>
    %32 = math.exp %31 : vector<4x128xf32>
    %cst_9 = arith.constant 1.000000e+00 : f32
    %33 = vector.broadcast %cst_9 : f32 to vector<4x128xf32>
    %34 = arith.addf %33, %32 : vector<4x128xf32>
    %35 = math.log %34 : vector<4x128xf32>
    %cst_10 = arith.constant 1.000000e+00 : f32
    %36 = vector.broadcast %cst_10 : f32 to vector<4x128xf32>
    %37 = arith.addf %36, %32 : vector<4x128xf32>
    %38 = tpu.reciprocal %37 {approx = true} : vector<4x128xf32> -> vector<4x128xf32>
    %cst_11 = arith.constant 0.000000e+00 : f32
    %39 = vector.broadcast %cst_11 : f32 to vector<4x128xf32>
    %40 = arith.cmpf oge, %15, %39 : vector<4x128xf32>
    %41 = arith.mulf %32, %38 : vector<4x128xf32>
    %42 = arith.select %40, %38, %41 : vector<4x128xi1>, vector<4x128xf32>
    %cst_12 = arith.constant 9.99999974E-5 : f32
    %cst_13 = arith.constant 0.999899983 : f32
    %43 = vector.broadcast %cst_12 : f32 to vector<4x128xf32>
    %44 = arith.maximumf %43, %42 : vector<4x128xf32>
    %45 = vector.broadcast %cst_13 : f32 to vector<4x128xf32>
    %46 = arith.minimumf %45, %44 : vector<4x128xf32>
    %cst_14 = arith.constant 0.000000e+00 : f32
    %47 = vector.broadcast %cst_14 : f32 to vector<4x128xf32>
    %48 = arith.subf %47, %15 : vector<4x128xf32>
    %cst_15 = arith.constant 0.000000e+00 : f32
    %49 = vector.broadcast %cst_15 : f32 to vector<4x128xf32>
    %50 = arith.maximumf %48, %49 : vector<4x128xf32>
    %51 = arith.addf %50, %35 : vector<4x128xf32>
    %cst_16 = arith.constant 0.000000e+00 : f32
    %52 = vector.broadcast %cst_16 : f32 to vector<4x128xf32>
    %53 = arith.subf %52, %51 : vector<4x128xf32>
    %cst_17 = arith.constant -9.21034049 : f32
    %cst_18 = arith.constant -1.000050e-04 : f32
    %54 = vector.broadcast %cst_17 : f32 to vector<4x128xf32>
    %55 = arith.maximumf %54, %53 : vector<4x128xf32>
    %56 = vector.broadcast %cst_18 : f32 to vector<4x128xf32>
    %57 = arith.minimumf %56, %55 : vector<4x128xf32>
    %cst_19 = arith.constant 0.000000e+00 : f32
    %58 = vector.broadcast %cst_19 : f32 to vector<4x128xf32>
    %59 = arith.maximumf %15, %58 : vector<4x128xf32>
    %60 = arith.addf %59, %35 : vector<4x128xf32>
    %cst_20 = arith.constant 0.000000e+00 : f32
    %61 = vector.broadcast %cst_20 : f32 to vector<4x128xf32>
    %62 = arith.subf %61, %60 : vector<4x128xf32>
    %cst_21 = arith.constant -9.21034049 : f32
    %cst_22 = arith.constant -1.000050e-04 : f32
    %63 = vector.broadcast %cst_21 : f32 to vector<4x128xf32>
    %64 = arith.maximumf %63, %62 : vector<4x128xf32>
    %65 = vector.broadcast %cst_22 : f32 to vector<4x128xf32>
    %66 = arith.minimumf %65, %64 : vector<4x128xf32>
    %cst_23 = arith.constant 1.000000e+00 : f32
    %67 = vector.broadcast %cst_23 : f32 to vector<4x128xf32>
    %68 = arith.subf %67, %20 : vector<4x128xf32>
    %69 = arith.mulf %68, %68 : vector<4x128xf32>
    %70 = arith.mulf %69, %69 : vector<4x128xf32>
    %cst_24 = arith.constant 1.000000e+00 : f32
    %71 = vector.broadcast %cst_24 : f32 to vector<4x128xf32>
    %72 = arith.subf %71, %46 : vector<4x128xf32>
    %73 = arith.mulf %72, %72 : vector<4x128xf32>
    %74 = arith.mulf %57, %73 : vector<4x128xf32>
    %75 = arith.mulf %74, %24 : vector<4x128xf32>
    %76 = arith.mulf %46, %46 : vector<4x128xf32>
    %77 = arith.mulf %66, %76 : vector<4x128xf32>
    %78 = arith.mulf %77, %70 : vector<4x128xf32>
    %79 = arith.mulf %78, %28 : vector<4x128xf32>
    %c0_25 = arith.constant 0 : index
    %c0_26 = arith.constant 0 : index
    %80 = vector.load %arg5[%c0_25, %c0_26] : memref<8x128xf32, #tpu.memory_space<vmem>>, vector<1x128xf32>
    %cst_27 = arith.constant dense<0.000000e+00> : vector<128xf32>
    %81 = vector.multi_reduction <add>, %75, %cst_27 [0] : vector<4x128xf32> to vector<128xf32>
    %82 = vector.shape_cast %81 : vector<128xf32> to vector<1x128xf32>
    %83 = arith.addf %80, %82 : vector<1x128xf32>
    %c0_28 = arith.constant 0 : index
    %c0_29 = arith.constant 0 : index
    %84 = vector.load %arg5[%c0_28, %c0_29] : memref<8x128xf32, #tpu.memory_space<vmem>>, vector<1x128xf32>
    tpu.vector_store %arg5[%c0_28, %c0_29], %83 {strides = array<i32>} : memref<8x128xf32, #tpu.memory_space<vmem>>, vector<1x128xf32>,
    %c1 = arith.constant 1 : index
    %c0_30 = arith.constant 0 : index
    %85 = vector.load %arg5[%c1, %c0_30] : memref<8x128xf32, #tpu.memory_space<vmem>>, vector<1x128xf32>
    %cst_31 = arith.constant dense<0.000000e+00> : vector<128xf32>
    %86 = vector.multi_reduction <add>, %79, %cst_31 [0] : vector<4x128xf32> to vector<128xf32>
    %87 = vector.shape_cast %86 : vector<128xf32> to vector<1x128xf32>
    %88 = arith.addf %85, %87 : vector<1x128xf32>
    %c1_32 = arith.constant 1 : index
    %c0_33 = arith.constant 0 : index
    %89 = vector.load %arg5[%c1_32, %c0_33] : memref<8x128xf32, #tpu.memory_space<vmem>>, vector<1x128xf32>
    tpu.vector_store %arg5[%c1_32, %c0_33], %88 {strides = array<i32>} : memref<8x128xf32, #tpu.memory_space<vmem>>, vector<1x128xf32>,
    %c2 = arith.constant 2 : index
    %c0_34 = arith.constant 0 : index
    %90 = vector.load %arg5[%c2, %c0_34] : memref<8x128xf32, #tpu.memory_space<vmem>>, vector<1x128xf32>
    %cst_35 = arith.constant dense<0.000000e+00> : vector<128xf32>
    %91 = vector.multi_reduction <add>, %24, %cst_35 [0] : vector<4x128xf32> to vector<128xf32>
    %92 = vector.shape_cast %91 : vector<128xf32> to vector<1x128xf32>
    %93 = arith.addf %90, %92 : vector<1x128xf32>
    %c2_36 = arith.constant 2 : index
    %c0_37 = arith.constant 0 : index
    %94 = vector.load %arg5[%c2_36, %c0_37] : memref<8x128xf32, #tpu.memory_space<vmem>>, vector<1x128xf32>
    tpu.vector_store %arg5[%c2_36, %c0_37], %93 {strides = array<i32>} : memref<8x128xf32, #tpu.memory_space<vmem>>, vector<1x128xf32>,
    %c0_i32_38 = arith.constant 0 : i32
    %95 = arith.cmpi eq, %arg1, %c0_i32_38 : i32
    %96 = arith.extui %95 : i1 to i32
    %c0_i32_39 = arith.constant 0 : i32
    %97 = arith.cmpi ne, %96, %c0_i32_39 : i32
    scf.if %97 {
      %c0_40 = arith.constant 0 : index
      %c0_41 = arith.constant 0 : index
      %98 = vector.load %arg5[%c0_40, %c0_41] : memref<8x128xf32, #tpu.memory_space<vmem>>, vector<8x128xf32>
      %c0_42 = arith.constant 0 : index
      %c0_43 = arith.constant 0 : index
      %c0_44 = arith.constant 0 : index
      %99 = vector.load %arg4[%c0_42, %c0_43, %c0_44] : memref<1x8x128xf32, #tpu.memory_space<vmem>>, vector<1x8x128xf32>
      %100 = vector.shape_cast %99 : vector<1x8x128xf32> to vector<8x128xf32>
      %101 = vector.shape_cast %98 : vector<8x128xf32> to vector<1x8x128xf32>
      tpu.vector_store %arg4[%c0_42, %c0_43, %c0_44], %101 {strides = array<i32>} : memref<1x8x128xf32, #tpu.memory_space<vmem>>, vector<1x8x128xf32>,
    } else {
    }
    return
  }
  func.func @transform_0(%arg0: i32, %arg1: i32) -> (i32, i32) {
    %c1_i32 = arith.constant 1 : i32
    %0 = arith.muli %arg0, %c1_i32 : i32
    %1 = arith.addi %0, %arg1 : i32
    %c0_i32 = arith.constant 0 : i32
    %2 = arith.minsi %1, %c0_i32 : i32
    %c0_i32_0 = arith.constant 0 : i32
    %c0_i32_1 = arith.constant 0 : i32
    return %2, %c0_i32_0 : i32, i32
  }
  func.func @transform_1(%arg0: i32, %arg1: i32) -> (i32, i32) {
    %c1_i32 = arith.constant 1 : i32
    %0 = arith.muli %arg0, %c1_i32 : i32
    %1 = arith.addi %0, %arg1 : i32
    %c0_i32 = arith.constant 0 : i32
    %2 = arith.minsi %1, %c0_i32 : i32
    %c0_i32_0 = arith.constant 0 : i32
    %c0_i32_1 = arith.constant 0 : i32
    return %2, %c0_i32_0 : i32, i32
  }
  func.func @transform_2(%arg0: i32, %arg1: i32) -> (i32, i32, i32) {
    %c0_i32 = arith.constant 0 : i32
    %c0_i32_0 = arith.constant 0 : i32
    %c0_i32_1 = arith.constant 0 : i32
    return %arg0, %c0_i32, %c0_i32_0 : i32, i32, i32
  }
}

</mosaic_0001>

<llo_original>
// kernel: tpu_custom_call.1
$region0: #{tpu_custom_call.1}
  #allocation0 [shape = 'u32[]', space=smem, size = 0x4, offset = 0x4, fixed_abs, tag = 'smem constant byte address 0x4 - core index']
  #allocation1 [shape = 'u32[72,128]{1,0:T(1,128)}', space=vmem, size = 0x9000, scoped, tag = 'internal scratch']
  #allocation2 [shape = 'f32[8,128]{1,0:T(8,128)}', space=vmem, size = 0x1000, scoped, tag = 'scratch operand']
  %s0 = inlined_call_operand.hbm [shape: f32[4,128], index: 0, kind: input, shape index: {}]
  %s1 = inlined_call_operand.hbm [shape: f32[4,128], index: 1, kind: input, shape index: {}]
  %s2 = inlined_call_operand.hbm [shape: f32[2,8,128], index: 2, kind: output, shape index: {}]
  %s3 = sld [smem:[#allocation0]]
  $region57: #{tpu_custom_call.1} parent=0
    _
  %s5 = ssub.s32 1, %s3
  %s6 = scalar_select 0, %s5, %s3
  $region1: #{tpu_custom_call.1} parent=0
    #allocation3 [shape = 'u8[4096]{0}', space=vmem, size = 0x1000, scoped, tag = 'input window, operand 0']
    #allocation4 [shape = 's32[2]{0}', space=sflag, size = 0x8, scoped, tag = 'scoped memory for tpu_custom_call.1']
    #allocation5 [shape = 's32[2]{0}', space=sflag, size = 0x8, scoped, tag = 'scoped memory for tpu_custom_call.1']
    #allocation6 [shape = 'u8[4096]{0}', space=vmem, size = 0x1000, scoped, tag = 'input window, operand 1']
    #allocation7 [shape = 's32[2]{0}', space=sflag, size = 0x8, scoped, tag = 'scoped memory for tpu_custom_call.1']
    #allocation8 [shape = 'u8[8192]{0}', space=vmem, size = 0x2000, scoped, tag = 'output window, operand 0']
    %7 = vsyncpa [#allocation4], 0
    %s8 = scalar_lea.sflag [#allocation4], 1
    %9 = vsyncpa %s8, 0
    %10 = vsyncpa [#allocation7], 0
    %s11 = scalar_lea.sflag [#allocation7], 1
    %12 = vsyncpa %s11, 0
    %13 = vsyncpa [#allocation5], 0
    %s14 = scalar_lea.sflag [#allocation5], 1
    %15 = vsyncpa %s14, 0
    loop: start=0, step=1, limit=4
    $region2: #{tpu_custom_call.1} parent=1 // loop_pre_header
      _
    $region3: #{tpu_custom_call.1} parent=1 // loop_header
      %s17 = sphi 0, %s21
      %p18 = scmp.ge.s32.totalorder %s17, 4
      %s24 = sphi 0, %s36
      %s25 = sphi 0, %s32
      %s26 = sphi 0, %s24
      %s27 = sphi 0, %s25
      %s28 = sphi 0, %s26
      %s29 = sphi 0, %s27
      %s45 = sphi 0, %s47
      %s48 = sphi 0, %s45
      %s49 = sphi 0, %s48
      %s65 = sphi 0, %s49
      %s77 = sphi 0, %s79
      %s80 = sphi 0, %s77
      %s81 = sphi 0, %s80
      %s97 = sphi 0, %s81
      %s103 = sphi 0, %s105
      %s106 = sphi 0, %s103
      %s107 = sphi 0, %s106
      %s123 = sphi 0, %s107
    $region4: #{tpu_custom_call.1} parent=1 // loop_header_branch
      %20 = sbr.rel (%p18) target = $region8
    $region5: #{tpu_custom_call.1} parent=1 // loop_body
      %s22 = ssub.s32 %s17, 1
      %s23 = ssub.s32 %s17, 2
      %s30 = sadd.s32 1, %s25
      %p31 = scmp.ge.s32.totalorder %s30, 1
      %s32 = scalar_select %p31, 0, %s30
      %s33 = sadd.s32 1, %s24
      %s34 = scalar_select %p31, %s33, %s24
      %p35 = scmp.ge.s32.totalorder %s34, 2
      %s36 = scalar_select %p35, 0, %s34
      %s37 = sadd.s32 %s24, %s25
      %p38 = scmp.lt.s32.totalorder %s37, 0
      %s39 = scalar_select %p38, %s37, 0
      %s40 = sadd.s32 %s36, %s32
      %p41 = scmp.lt.s32.totalorder %s40, 0
      %s42 = scalar_select %p41, %s40, 0
      %s43 = ssub.s32 %s39, %s42
      %p44 = scmp.eq.s32.totalorder %s43, 0
      %s46 = sadd.s32 %s45, 1
      %s47 = scalar_select %p44, %s45, %s46
      %p50 = pneg %p44
      %p51 = scmp.eq.s32.totalorder %s17, 1
      %p52 = por %p50, %p51
      %p53 = scmp.ne.s32.totalorder %s45, %s48
      %p54 = scmp.eq.s32.totalorder %s17, 0
      %p55 = por %p53, %p54
      %p56 = scmp.ne.s32.totalorder %s45, %s48
      %p57 = scmp.eq.s32.totalorder %s22, 1
      %p58 = por %p56, %p57
      %p59 = scmp.ne.s32.totalorder %s48, %s49
      %p60 = scmp.eq.s32.totalorder %s22, 0
      %p61 = por %p59, %p60
      %p62 = scmp.ne.s32.totalorder %s48, %s49
      %p63 = scmp.eq.s32.totalorder %s23, 1
      %p64 = por %p62, %p63
      %p66 = scmp.ne.s32.totalorder %s49, %s65
      %p67 = scmp.eq.s32.totalorder %s23, 0
      %p68 = por %p66, %p67
      %s69 = sadd.s32 %s24, %s25
      %p70 = scmp.lt.s32.totalorder %s69, 0
      %s71 = scalar_select %p70, %s69, 0
      %s72 = sadd.s32 %s36, %s32
      %p73 = scmp.lt.s32.totalorder %s72, 0
      %s74 = scalar_select %p73, %s72, 0
      %s75 = ssub.s32 %s71, %s74
      %p76 = scmp.eq.s32.totalorder %s75, 0
      %s78 = sadd.s32 %s77, 1
      %s79 = scalar_select %p76, %s77, %s78
      %p82 = pneg %p76
      %p83 = scmp.eq.s32.totalorder %s17, 1
      %p84 = por %p82, %p83
      %p85 = scmp.ne.s32.totalorder %s77, %s80
      %p86 = scmp.eq.s32.totalorder %s17, 0
      %p87 = por %p85, %p86
      %p88 = scmp.ne.s32.totalorder %s77, %s80
      %p89 = scmp.eq.s32.totalorder %s22, 1
      %p90 = por %p88, %p89
      %p91 = scmp.ne.s32.totalorder %s80, %s81
      %p92 = scmp.eq.s32.totalorder %s22, 0
      %p93 = por %p91, %p92
      %p94 = scmp.ne.s32.totalorder %s80, %s81
      %p95 = scmp.eq.s32.totalorder %s23, 1
      %p96 = por %p94, %p95
      %p98 = scmp.ne.s32.totalorder %s81, %s97
      %p99 = scmp.eq.s32.totalorder %s23, 0
      %p100 = por %p98, %p99
      %s101 = ssub.s32 %s24, %s36
      %p102 = scmp.eq.s32.totalorder %s101, 0
      %s104 = sadd.s32 %s103, 1
      %s105 = scalar_select %p102, %s103, %s104
      %p108 = pneg %p102
      %p109 = scmp.eq.s32.totalorder %s17, 1
      %p110 = por %p108, %p109
      %p111 = scmp.ne.s32.totalorder %s103, %s106
      %p112 = scmp.eq.s32.totalorder %s17, 0
      %p113 = por %p111, %p112
      %p114 = scmp.ne.s32.totalorder %s103, %s106
      %p115 = scmp.eq.s32.totalorder %s22, 1
      %p116 = por %p114, %p115
      %p117 = scmp.ne.s32.totalorder %s106, %s107
      %p118 = scmp.eq.s32.totalorder %s22, 0
      %p119 = por %p117, %p118
      %p120 = scmp.ne.s32.totalorder %s106, %s107
      %p121 = scmp.eq.s32.totalorder %s23, 1
      %p122 = por %p120, %p121
      %p124 = scmp.ne.s32.totalorder %s107, %s123
      %p125 = scmp.eq.s32.totalorder %s23, 0
      %p126 = por %p124, %p125
      %p127 = scmp.le.s32.totalorder 1, %s17
      %p128 = scmp.lt.s32.totalorder %s17, 3
      %p129 = pnand %p127, %p128
      %p130 = pneg %p129
      // Predicated region
      $region9: #{tpu_custom_call.1} parent=5 // pred_check
        _
      $region10: #{tpu_custom_call.1} parent=5 // pred_check_branch
        %132 = sbr.rel (%p129) target = $region12
      $region11: #{tpu_custom_call.1} parent=5 // pred_region
        %s133 = ssub.s32 %s17, 1
      $region12: #{tpu_custom_call.1} parent=5 // pred_fallthru
        _
      %p134 = scmp.lt.s32.totalorder %s17, 2
      // Predicated region
      $region13: #{tpu_custom_call.1} parent=5 // pred_check
        %p135 = pneg %p134
      $region14: #{tpu_custom_call.1} parent=5 // pred_check_branch
        %137 = sbr.rel (%p135) target = $region16
      $region15: #{tpu_custom_call.1} parent=5 // pred_region
        // Predicated region
        $region17: #{tpu_custom_call.1} parent=15 // pred_check
          %p138 = pneg %p55
        $region18: #{tpu_custom_call.1} parent=15 // pred_check_branch
          %140 = sbr.rel (%p138) target = $region20
        $region19: #{tpu_custom_call.1} parent=15 // pred_region
          %s141 = sand.u32 %s45, 1
          %s142 = scalar_lea.sflag [#allocation4], %s141
          %s143 = sand.u32 %s45, 1
          %s144 = smul.addr %s143, 4
          %s145 = scalar_lea.vmem [#allocation3], %s144
          %s146 = sadd.s32 %s24, %s25
          %p147 = scmp.lt.s32.totalorder %s146, 0
          %s148 = scalar_select %p147, %s146, 0
          %150 = vsyncadd %s142, 0
          %s151 = smul.addr %s148, 4
          %s152 = scalar_lea.hbm %s0, %s151
          %s154 = sshll.u32 %s152, 4
          %s155 = int_to_ptr.hbm [resolvable:$true] %s154
          %s156 = sshll.u32 %s145, 4
          %s157 = int_to_ptr.vmem [resolvable:$true] %s156
          %159 = dma.hbm_to_vmem [thread:$0]  %s155, 64, %s157, %s142
        $region20: #{tpu_custom_call.1} parent=15 // pred_fallthru
          _
        // Predicated region
        $region21: #{tpu_custom_call.1} parent=15 // pred_check
          %p160 = pneg %p87
        $region22: #{tpu_custom_call.1} parent=15 // pred_check_branch
          %162 = sbr.rel (%p160) target = $region24
        $region23: #{tpu_custom_call.1} parent=15 // pred_region
          %s163 = sand.u32 %s77, 1
          %s164 = scalar_lea.sflag [#allocation7], %s163
          %s165 = sand.u32 %s77, 1
          %s166 = smul.addr %s165, 4
          %s167 = scalar_lea.vmem [#allocation6], %s166
          %s168 = sadd.s32 %s24, %s25
          %p169 = scmp.lt.s32.totalorder %s168, 0
          %s170 = scalar_select %p169, %s168, 0
          %172 = vsyncadd %s164, 0
          %s173 = smul.addr %s170, 4
          %s174 = scalar_lea.hbm %s1, %s173
          %s176 = sshll.u32 %s174, 4
          %s177 = int_to_ptr.hbm [resolvable:$true] %s176
          %s178 = sshll.u32 %s167, 4
          %s179 = int_to_ptr.vmem [resolvable:$true] %s178
          %181 = dma.hbm_to_vmem [thread:$0]  %s177, 64, %s179, %s164
        $region24: #{tpu_custom_call.1} parent=15 // pred_fallthru
          _
      $region16: #{tpu_custom_call.1} parent=5 // pred_fallthru
        _
      %p182 = scmp.le.s32.totalorder 1, %s17
      %p183 = scmp.lt.s32.totalorder %s17, 3
      %p184 = pnand %p182, %p183
      %p185 = pneg %p184
      // Predicated region
      $region25: #{tpu_custom_call.1} parent=5 // pred_check
        _
      $region26: #{tpu_custom_call.1} parent=5 // pred_check_branch
        %187 = sbr.rel (%p184) target = $region28
      $region27: #{tpu_custom_call.1} parent=5 // pred_region
        %s188 = ssub.s32 %s17, 1
        %s189 = sand.u32 %s48, 1
        %s190 = scalar_lea.sflag [#allocation4], %s189
        %s191 = sand.u32 %s48, 1
        %s192 = smul.addr %s191, 4
        %s193 = scalar_lea.vmem [#allocation3], %s192
        // Predicated region
        $region29: #{tpu_custom_call.1} parent=27 // pred_check
          %p194 = pneg %p61
        $region30: #{tpu_custom_call.1} parent=27 // pred_check_branch
          %196 = sbr.rel (%p194) target = $region32
        $region31: #{tpu_custom_call.1} parent=27 // pred_region
          %198 = dma.done %s190, 64
        $region32: #{tpu_custom_call.1} parent=27 // pred_fallthru
          _
        %s199 = sand.u32 %s80, 1
        %s200 = scalar_lea.sflag [#allocation7], %s199
        %s201 = sand.u32 %s80, 1
        %s202 = smul.addr %s201, 4
        %s203 = scalar_lea.vmem [#allocation6], %s202
        // Predicated region
        $region33: #{tpu_custom_call.1} parent=27 // pred_check
          %p204 = pneg %p93
        $region34: #{tpu_custom_call.1} parent=27 // pred_check_branch
          %206 = sbr.rel (%p204) target = $region36
        $region35: #{tpu_custom_call.1} parent=27 // pred_region
          %208 = dma.done %s200, 64
        $region36: #{tpu_custom_call.1} parent=27 // pred_fallthru
          _
        %s209 = sand.u32 %s48, 1
        %s210 = scalar_lea.sflag [#allocation4], %s209
        %s211 = sand.u32 %s48, 1
        %s212 = smul.addr %s211, 4
        %s213 = scalar_lea.vmem [#allocation3], %s212
        %p214 = pneg %p61
        %p215 = pneg %p58
        %s216 = sand.u32 %s80, 1
        %s217 = scalar_lea.sflag [#allocation7], %s216
        %s218 = sand.u32 %s80, 1
        %s219 = smul.addr %s218, 4
        %s220 = scalar_lea.vmem [#allocation6], %s219
        %p221 = pneg %p93
        %p222 = pneg %p90
        %p223 = pneg %p119
        %p224 = pneg %p116
        %s225 = sand.u32 %s106, 1
        %s226 = scalar_lea.sflag [#allocation5], %s225
        %s227 = sand.u32 %s106, 1
        %s228 = smul.addr %s227, 8
        %s229 = scalar_lea.vmem [#allocation8], %s228
        %s230 = sadd.s32 %s26, %s27
        %p231 = scmp.lt.s32.totalorder %s230, 0
        %s232 = scalar_select %p231, %s230, 0
        %s233 = sadd.s32 %s26, %s27
        %p234 = scmp.lt.s32.totalorder %s233, 0
        %s235 = scalar_select %p234, %s233, 0
        %p236 = scmp.eq.s32.totalorder %s27, 0
        // Predicated region
        $region37: #{tpu_custom_call.1} parent=27 // pred_check
          %p237 = pneg %p236
        $region38: #{tpu_custom_call.1} parent=27 // pred_check_branch
          %239 = sbr.rel (%p237) target = $region40
        $region39: #{tpu_custom_call.1} parent=27 // pred_region
          %240 = vst [vmem:[#allocation2] sm:$0xff] 0.0
        $region40: #{tpu_custom_call.1} parent=27 // pred_fallthru
          _
        %s241 = sadd.s32 %s26, %s27
        %s242 = smul.u32 %s241, 4
        %v243 = vlaneseq
        %v244 = vshrl.u32 %v243, 7
        %v245 = vstv %s242
        %v246 = vadd.s32 %v245, %v244
        %vm247 = vcmp.lt.s32.totalorder %v246, 4
        %v248 = vld [vmem:[%s193] sm:$0xf]
        %v249 = vsel %vm247, 1, 0
        %vm250 = vcmp.eq.s32.totalorder %v249, 1
        %v251 = vsel %vm250, %v248, 0.0
        %v252 = vld [vmem:[%s203] sm:$0xf]
        %v253 = vsel %vm250, %v252, 2.0
        %vm254 = vcmp.eq.f32.partialorder %v253, 1.0
        %v255 = vsel %vm254, 1, 0
        %v256 = vcvt.s32.f32 %v255
        %vm257 = vcmp.lt.f32.partialorder %v253, 1.0
        %v258 = vsel %vm257, 1, 0
        %v259 = vcvt.s32.f32 %v258
        %v260 = vand.u32 2147483647, %v251
        %v261 = vsub.f32 0.0, %v260
        %v262 = vmul.f32 %v261, 1.442695
        %v263 = vpow.pop %v262
        %v264 = vadd.f32 %v263, 1.0
        %v265 = vlog2.pop %v264
        %v266 = vmul.f32 %v265, 0.6931472
        %v267 = vrcp.pop %v264
        %vm268 = vcmp.ge.f32.partialorder %v251, 0.0
        %v269 = vmul.f32 %v263, %v267
        %v270 = vsel %vm268, %v267, %v269
        %v271 = vmax.f32 %v270, 0.0001
        %v272 = vmin.f32 %v271, 0.9999
        %v273 = vsub.f32 0.0, %v251
        %v274 = vmax.f32 %v273, 0.0
        %v275 = vadd.f32 %v274, %v266
        %v276 = vsub.f32 0.0, %v275
        %v277 = vmax.f32 %v276, -9.2103405
        %v278 = vmin.f32 %v277, -0.000100005
        %v279 = vmax.f32 %v251, 0.0
        %v280 = vadd.f32 %v279, %v266
        %v281 = vsub.f32 0.0, %v280
        %v282 = vmax.f32 %v281, -9.2103405
        %v283 = vmin.f32 %v282, -0.000100005
        %v284 = vsub.f32 1.0, %v253
        %v285 = vmul.f32 %v284, %v284
        %v286 = vmul.f32 %v285, %v285
        %v287 = vsub.f32 1.0, %v272
        %v288 = vmul.f32 %v287, %v287
        %v289 = vmul.f32 %v278, %v288
        %v290 = vmul.f32 %v289, %v256
        %v291 = vmul.f32 %v272, %v272
        %v292 = vmul.f32 %v283, %v291
        %v293 = vmul.f32 %v292, %v286
        %v294 = vmul.f32 %v293, %v259
        %v295 = vld [vmem:[#allocation2] sm:$0x1]
        %vm296 = vcmask 1043456
        %v297 = vsel %vm296, %v290, 0.0
        %v298 = vrot.slane %v297, 4
        %v299 = vadd.f32 %v297, %v298
        %v300 = vrot.slane %v299, 2
        %v301 = vadd.f32 %v299, %v300
        %v302 = vrot.slane %v301, 1
        %v303 = vadd.f32 %v301, %v302
        %v304 = vadd.f32 %v295, %v303
        %305 = vst [vmem:[#allocation2] sm:$0x1] %v304
        %v306 = vld [vmem:[#allocation2 + $0x1] sm:$0x1]
        %v307 = vsel %vm296, %v294, 0.0
        %v308 = vrot.slane %v307, 4
        %v309 = vadd.f32 %v307, %v308
        %v310 = vrot.slane %v309, 2
        %v311 = vadd.f32 %v309, %v310
        %v312 = vrot.slane %v311, 1
        %v313 = vadd.f32 %v311, %v312
        %v314 = vadd.f32 %v306, %v313
        %315 = vst [vmem:[#allocation2 + $0x1] sm:$0x1] %v314
        %v316 = vld [vmem:[#allocation2 + $0x2] sm:$0x1]
        %v317 = vsel %vm296, %v256, 0.0
        %v318 = vrot.slane %v317, 4
        %v319 = vadd.f32 %v317, %v318
        %v320 = vrot.slane %v319, 2
        %v321 = vadd.f32 %v319, %v320
        %v322 = vrot.slane %v321, 1
        %v323 = vadd.f32 %v321, %v322
        %v324 = vadd.f32 %v316, %v323
        %325 = vst [vmem:[#allocation2 + $0x2] sm:$0x1] %v324
        // Predicated region
        $region41: #{tpu_custom_call.1} parent=27 // pred_check
          %p326 = pneg %p236
        $region42: #{tpu_custom_call.1} parent=27 // pred_check_branch
          %328 = sbr.rel (%p326) target = $region44
        $region43: #{tpu_custom_call.1} parent=27 // pred_region
          %v329 = vld [vmem:[#allocation2] sm:$0xff]
          %330 = vst [vmem:[%s229] sm:$0xff] %v329
        $region44: #{tpu_custom_call.1} parent=27 // pred_fallthru
          _
        %s331 = sand.u32 %s106, 1
        %s332 = scalar_lea.sflag [#allocation5], %s331
        %s333 = sand.u32 %s106, 1
        %s334 = smul.addr %s333, 8
        %s335 = scalar_lea.vmem [#allocation8], %s334
        // Predicated region
        $region45: #{tpu_custom_call.1} parent=27 // pred_check
          %p336 = pneg %p116
        $region46: #{tpu_custom_call.1} parent=27 // pred_check_branch
          %338 = sbr.rel (%p336) target = $region48
        $region47: #{tpu_custom_call.1} parent=27 // pred_region
          %340 = vsyncadd %s332, 0
          %s341 = smul.addr %s26, 8
          %s342 = scalar_lea.hbm %s2, %s341
          %s344 = sshll.u32 %s335, 4
          %s345 = int_to_ptr.vmem [resolvable:$true] %s344
          %s346 = sshll.u32 %s342, 4
          %s347 = int_to_ptr.hbm [resolvable:$true] %s346
          %349 = dma.vmem_to_hbm [thread:$0]  %s345, 128, %s347, %s332
        $region48: #{tpu_custom_call.1} parent=27 // pred_fallthru
          _
      $region28: #{tpu_custom_call.1} parent=5 // pred_fallthru
        _
      %p350 = scmp.le.s32.totalorder 2, %s17
      // Predicated region
      $region49: #{tpu_custom_call.1} parent=5 // pred_check
        %p351 = pneg %p350
      $region50: #{tpu_custom_call.1} parent=5 // pred_check_branch
        %353 = sbr.rel (%p351) target = $region52
      $region51: #{tpu_custom_call.1} parent=5 // pred_region
        %s354 = ssub.s32 %s17, 2
        // Predicated region
        $region53: #{tpu_custom_call.1} parent=51 // pred_check
          %p355 = pneg %p122
        $region54: #{tpu_custom_call.1} parent=51 // pred_check_branch
          %357 = sbr.rel (%p355) target = $region56
        $region55: #{tpu_custom_call.1} parent=51 // pred_region
          %s358 = sand.u32 %s107, 1
          %s359 = scalar_lea.sflag [#allocation5], %s358
          %s360 = sand.u32 %s107, 1
          %s361 = smul.addr %s360, 8
          %s362 = scalar_lea.vmem [#allocation8], %s361
          %364 = dma.done %s359, 128
        $region56: #{tpu_custom_call.1} parent=51 // pred_fallthru
          _
      $region52: #{tpu_custom_call.1} parent=5 // pred_fallthru
        _
    $region6: #{tpu_custom_call.1} parent=1 // loop_footer
      %s21 = sadd.s32 1, %s17
    $region7: #{tpu_custom_call.1} parent=1 // loop_footer_branch
      %16 = sbr.rel target = $region3
    $region8: #{tpu_custom_call.1} parent=1 // loop_exit
      _
    %365 = vsyncpa [#allocation4], 1
    %s366 = scalar_lea.sflag [#allocation4], 1
    %367 = vsyncpa %s366, 1
    %368 = vsyncpa [#allocation7], 1
    %s369 = scalar_lea.sflag [#allocation7], 1
    %370 = vsyncpa %s369, 1
    %371 = vsyncpa [#allocation5], 1
    %s372 = scalar_lea.sflag [#allocation5], 1
    %373 = vsyncpa %s372, 1

</llo_original>
